<compile_context>
chip_gen: v6e
topology: v6e:2x2x1
jax: 0.10.0
libtpu: 0.0.40
codegen_flags: <defaults>
</compile_context>

<pallas_src>
from functools import partial

import jax
import jax.numpy as jnp
from jax.experimental import pallas as pl
from jax.experimental.pallas import tpu as pltpu


def down_wt_kernel(x_ref, w_ref, b_ref, o_ref):
    # x_ref: (4C, TM) raw polyphase activations, channel-major, lane-dense
    # w_ref: (OCp, 4C) Haar-folded 1x1-conv weight
    # b_ref: (OCp, 1)  f32 bias
    # o_ref: (OCp, TM) output block (maps 1:1 onto the NCHW result)
    x = x_ref[...]
    w = w_ref[...]
    if x.dtype != w.dtype:          # static at trace time (bf16-matmul path)
        x = x.astype(w.dtype)
    acc = jnp.dot(w, x, preferred_element_type=jnp.float32)
    acc = acc + b_ref[...]
    o_ref[...] = jnp.maximum(acc, 0.0).astype(o_ref.dtype)


def _ceil_div(a, b):
    return -(-a // b)


def _pick_tile_p2(P2, K, OC_pad, in_itemsize, out_itemsize, n_batch,
                  vmem_budget_bytes=16 * 1024 * 1024, min_total_steps=8):
    """Largest lane tile TM (multiple of 128, or the full P2) such that the
    double-buffered in/out blocks PLUS the double-buffered weight/bias fit a
    conservative cross-generation VMEM budget, while keeping >= ~min_total_steps
    grid steps for pipeline overlap and v7x dual-TC balance."""
    if P2 <= 128:
        return P2
    # per-lane cost of the pipelined blocks (x2 double buffers each)
    per_lane = 2 * (K * in_itemsize + OC_pad * out_itemsize)
    # constant-index weight + f32 bias blocks (also double-buffered by default)
    const_bytes = 2 * OC_pad * (K * in_itemsize + 4)
    avail = max(vmem_budget_bytes - const_bytes, 128 * per_lane)
    tm = max(128, (avail // per_lane) // 128 * 128)
    # keep enough grid steps: N * n_tiles >= min_total_steps (when possible)
    tiles_needed = max(1, _ceil_div(min_total_steps, n_batch))
    tm_cap = max(128, _ceil_div(_ceil_div(P2, tiles_needed), 128) * 128)
    tm = min(tm, tm_cap)
    return min(tm, P2)   # multiple of 128, or == P2 (full dim) -> always legal


@partial(jax.jit, static_argnames=("use_bf16_matmul",))
def down_wt(x, conv_w, conv_b, use_bf16_matmul=False):
    """x: (N, C, H, W); conv_w: (OC, 4C, 1, 1); conv_b: (OC,) -> (N, OC, H/2, W/2)."""
    N, C, H, W = x.shape
    assert H % 2 == 0 and W % 2 == 0
    H2, W2 = H // 2, W // 2
    P2 = H2 * W2
    OC = conv_w.shape[0]
    K = 4 * C

    mat_dtype = jnp.bfloat16 if use_bf16_matmul else x.dtype
    in_itemsize = jnp.dtype(mat_dtype).itemsize
    out_itemsize = jnp.dtype(x.dtype).itemsize

    # Pad OC to the sublane granule of the output dtype so stores are unmasked.
    granule = max(8, 32 // out_itemsize)          # 8 for f32, 16 for bf16
    OCp = _ceil_div(OC, granule) * granule

    # ---- fold the Haar butterfly into the conv weight (tiny, wrapper-side) ----
    # conv input-channel order is [yL, band0, band1, band2] (each C channels).
    w = conv_w.reshape(OC, 4, C).astype(jnp.float32)
    w0, w1, w2, w3 = w[:, 0], w[:, 1], w[:, 2], w[:, 3]
    w_fold = 0.5 * jnp.concatenate(
        [w0 + w1 + w2 + w3,       # coefficient of a = x[2r,   2c]
         w0 + w1 - w2 - w3,       # coefficient of b = x[2r,   2c+1]
         w0 - w1 + w2 - w3,       # coefficient of c = x[2r+1, 2c]
         w0 - w1 - w2 + w3],      # coefficient of d = x[2r+1, 2c+1]
        axis=1)                                              # (OC, 4C) f32
    w_fold = w_fold.astype(mat_dtype)
    bias = conv_b.astype(jnp.float32)
    if OCp != OC:
        w_fold = jnp.pad(w_fold, ((0, OCp - OC), (0, 0)))
        bias = jnp.pad(bias, (0, OCp - OC))
    bias = bias.reshape(OCp, 1)

    # ---- polyphase extraction -> (N, 4C, P2), 4C ordered [a|b|c|d] ----
    # TODO(synk): fuse this into the kernel (needs a robust lane-stride-2
    # deinterleave on-chip; kept as an XLA slice+concat pass for now).
    a = x[:, :, 0::2, 0::2]
    b = x[:, :, 0::2, 1::2]
    c = x[:, :, 1::2, 0::2]
    d = x[:, :, 1::2, 1::2]
    arr = jnp.concatenate([a, b, c, d], axis=1).astype(mat_dtype).reshape(N, K, P2)

    TM = _pick_tile_p2(P2, K, OCp, in_itemsize, out_itemsize, N)
    n_tiles = _ceil_div(P2, TM)
    grid = (N, n_tiles)

    cost = pl.CostEstimate(
        flops=2 * N * P2 * K * OCp,
        transcendentals=0,
        bytes_accessed=(N * K * P2 * in_itemsize
                        + OCp * K * in_itemsize + OCp * 4
                        + N * OCp * P2 * out_itemsize))

    out = pl.pallas_call(
        down_wt_kernel,
        out_shape=jax.ShapeDtypeStruct((N, OCp, P2), x.dtype),
        grid_spec=pltpu.PrefetchScalarGridSpec(
            num_scalar_prefetch=0,
            grid=grid,
            in_specs=[
                pl.BlockSpec((None, K, TM), lambda n, i: (n, 0, i)),
                pl.BlockSpec((OCp, K), lambda n, i: (0, 0)),
                pl.BlockSpec((OCp, 1), lambda n, i: (0, 0)),
            ],
            out_specs=pl.BlockSpec((None, OCp, TM), lambda n, i: (n, 0, i)),
        ),
        compiler_params=pltpu.CompilerParams(
            dimension_semantics=("parallel", "parallel"),
            vmem_limit_bytes=32 * 1024 * 1024),
        cost_estimate=cost,
    )(arr, w_fold, bias)

    # (N, OCp, P2) is already NCHW-ordered -> free metadata reshape only.
    out = out.reshape(N, OCp, H2, W2)
    if OCp != OC:
        out = out[:, :OC]
    return out


def down_wt_ref(x, conv_w, conv_b):
    """Pure-JAX reference (same math as the PyTorch module)."""
    N, C, H, W = x.shape
    a = x[:, :, 0::2, 0::2]
    b = x[:, :, 0::2, 1::2]
    c = x[:, :, 1::2, 0::2]
    d = x[:, :, 1::2, 1::2]
    yL = 0.5 * (a + b + c + d)
    s0 = 0.5 * (a + b - c - d)
    s1 = 0.5 * (a - b + c - d)
    s2 = 0.5 * (a - b - c + d)
    feat = jnp.concatenate([yL, s0, s1, s2], axis=1)          # (N, 4C, H2, W2)
    w = conv_w.reshape(conv_w.shape[0], 4 * C)                # (OC, 4C)
    y = jnp.einsum('ncHW,oc->noHW', feat, w) + conv_b[None, :, None, None]
    return jnp.maximum(y, 0.0)


if __name__ == "__main__":
    key = jax.random.PRNGKey(0)
    k_x, k_w, k_b = jax.random.split(key, 3)

    N, C, H, W = 2, 4, 16, 16
    OC = 8

    x = jax.random.normal(k_x, (N, C, H, W), dtype=jnp.float32)
    # synthetic 1x1-conv parameters (shapes per nn.Conv2d(4C, OC, 1))
    conv_w = 0.1 * jax.random.normal(k_w, (OC, 4 * C, 1, 1), dtype=jnp.float32)
    conv_b = 0.1 * jax.random.normal(k_b, (OC,), dtype=jnp.float32)

    y = down_wt(x, conv_w, conv_b)
    y = jax.block_until_ready(y)

    y_ref = down_wt_ref(x, conv_w, conv_b)
    assert y.shape == (N, OC, H // 2, W // 2), y.shape
    assert jnp.allclose(y, y_ref, atol=1e-5, rtol=1e-5), "mismatch vs reference"

    print("KERNEL_OK")
</pallas_src>

<mosaic_0001>
module attributes {stable_mosaic.version = 11 : i64} {
  func.func @down_wt_kernel(%arg0: i32, %arg1: i32, %arg2: memref<1x16x64xf32, #tpu.memory_space<vmem>>, %arg3: memref<8x16xf32, #tpu.memory_space<vmem>>, %arg4: memref<8x1xf32, #tpu.memory_space<vmem>>, %arg5: memref<1x8x64xf32, #tpu.memory_space<vmem>>) attributes {dimension_semantics = [#tpu.dimension_semantics<parallel>, #tpu.dimension_semantics<parallel>], iteration_bounds = array<i64: 2, 1>, scalar_prefetch = 0 : i64, scratch_operands = 0 : i64, tpu.core_type = #tpu.core_type<tc>, window_params = [{transform_indices = @transform_0, window_bounds = array<i64: 1, 16, 64>}, {pipeline_mode = #tpu.pipeline_mode<synchronous>, transform_indices = @transform_1, window_bounds = array<i64: 8, 16>}, {pipeline_mode = #tpu.pipeline_mode<synchronous>, transform_indices = @transform_2, window_bounds = array<i64: 8, 1>}, {transform_indices = @transform_3, window_bounds = array<i64: 1, 8, 64>}]} {
    %c0 = arith.constant 0 : index
    %c0_0 = arith.constant 0 : index
    %c0_1 = arith.constant 0 : index
    %0 = vector.load %arg2[%c0, %c0_0, %c0_1] : memref<1x16x64xf32, #tpu.memory_space<vmem>>, vector<1x16x64xf32>
    %1 = vector.shape_cast %0 : vector<1x16x64xf32> to vector<16x64xf32>
    %c0_2 = arith.constant 0 : index
    %c0_3 = arith.constant 0 : index
    %2 = vector.load %arg3[%c0_2, %c0_3] : memref<8x16xf32, #tpu.memory_space<vmem>>, vector<8x16xf32>
    %cst = arith.constant dense<0.000000e+00> : vector<8x64xf32>
    %3 = tpu.matmul %2, %1, %cst {dimension_numbers = #tpu.dot_dimension_numbers<[1], [0], [0], [1], [0, 0, 1, 1], [], []>} : vector<8x16xf32>, vector<16x64xf32>, vector<8x64xf32> -> vector<8x64xf32>
    %c0_4 = arith.constant 0 : index
    %c0_5 = arith.constant 0 : index
    %4 = vector.load %arg4[%c0_4, %c0_5] : memref<8x1xf32, #tpu.memory_space<vmem>>, vector<8x1xf32>
    %5 = vector.broadcast %4 : vector<8x1xf32> to vector<8x64xf32>
    %6 = arith.addf %3, %5 : vector<8x64xf32>
    %cst_6 = arith.constant 0.000000e+00 : f32
    %7 = vector.broadcast %cst_6 : f32 to vector<8x64xf32>
    %8 = arith.maximumf %6, %7 : vector<8x64xf32>
    %c0_7 = arith.constant 0 : index
    %c0_8 = arith.constant 0 : index
    %c0_9 = arith.constant 0 : index
    %9 = vector.load %arg5[%c0_7, %c0_8, %c0_9] : memref<1x8x64xf32, #tpu.memory_space<vmem>>, vector<1x8x64xf32>
    %10 = vector.shape_cast %9 : vector<1x8x64xf32> to vector<8x64xf32>
    %11 = vector.shape_cast %8 : vector<8x64xf32> to vector<1x8x64xf32>
    tpu.vector_store %arg5[%c0_7, %c0_8, %c0_9], %11 {strides = array<i32>} : memref<1x8x64xf32, #tpu.memory_space<vmem>>, vector<1x8x64xf32>,
    return
  }
  func.func @transform_0(%arg0: i32, %arg1: i32) -> (i32, i32, i32) {
    %c0_i32 = arith.constant 0 : i32
    %c0_i32_0 = arith.constant 0 : i32
    return %arg0, %c0_i32, %arg1 : i32, i32, i32
  }
  func.func @transform_1(%arg0: i32, %arg1: i32) -> (i32, i32) {
    %c0_i32 = arith.constant 0 : i32
    %c0_i32_0 = arith.constant 0 : i32
    %c0_i32_1 = arith.constant 0 : i32
    return %c0_i32, %c0_i32_0 : i32, i32
  }
  func.func @transform_2(%arg0: i32, %arg1: i32) -> (i32, i32) {
    %c0_i32 = arith.constant 0 : i32
    %c0_i32_0 = arith.constant 0 : i32
    %c0_i32_1 = arith.constant 0 : i32
    return %c0_i32, %c0_i32_0 : i32, i32
  }
  func.func @transform_3(%arg0: i32, %arg1: i32) -> (i32, i32, i32) {
    %c0_i32 = arith.constant 0 : i32
    %c0_i32_0 = arith.constant 0 : i32
    return %arg0, %c0_i32, %arg1 : i32, i32, i32
  }
}

</mosaic_0001>

<llo_original>
// kernel: down_wt.1
$region0: #{down_wt.1}
  #allocation0 [shape = 'u32[]', space=smem, size = 0x4, offset = 0x4, fixed_abs, tag = 'smem constant byte address 0x4 - core index']
  #allocation1 [shape = 'u32[144,128]{1,0:T(1,128)}', space=vmem, size = 0x12000, scoped, tag = 'internal scratch']
  %s0 = inlined_call_operand.vmem [shape: f32[2,16,64], index: 0, kind: input, shape index: {}]
  %s1 = inlined_call_operand.vmem [shape: f32[8,16], index: 1, kind: input, shape index: {}]
  %s2 = inlined_call_operand.vmem [shape: f32[8,1], index: 2, kind: input, shape index: {}]
  %s3 = inlined_call_operand.vmem [shape: f32[2,8,64], index: 3, kind: output, shape index: {}]
  %s4 = sld [smem:[#allocation0]]
  $region45: #{down_wt.1} parent=0
    _
  %s6 = ssub.s32 1, %s4
  %s7 = scalar_select 0, %s6, %s4
  loop: start=0, step=1, limit=4
  $region2: #{down_wt.1} parent=0 // loop_pre_header
    _
  $region3: #{down_wt.1} parent=0 // loop_header
    %s9 = sphi 0, %s13
    %p10 = scmp.ge.s32.totalorder %s9, 4
    %s16 = sphi 0, %s28
    %s17 = sphi 0, %s24
    %s18 = sphi 0, %s16
    %s19 = sphi 0, %s17
    %s20 = sphi 0, %s18
    %s21 = sphi 0, %s19
    %s33 = sphi 0, %s35
    %s36 = sphi 0, %s33
    %s37 = sphi 0, %s36
    %s53 = sphi 0, %s37
    %s57 = sphi 0, %s57
    %s59 = sphi 0, %s57
    %s60 = sphi 0, %s59
    %s74 = sphi 0, %s60
    %s78 = sphi 0, %s78
    %s80 = sphi 0, %s78
    %s81 = sphi 0, %s80
    %s95 = sphi 0, %s81
    %s103 = sphi 0, %s105
    %s106 = sphi 0, %s103
    %s107 = sphi 0, %s106
    %s123 = sphi 0, %s107
  $region4: #{down_wt.1} parent=0 // loop_header_branch
    %12 = sbr.rel (%p10) target = $region8
  $region5: #{down_wt.1} parent=0 // loop_body
    %s14 = ssub.s32 %s9, 1
    %s15 = ssub.s32 %s9, 2
    %s22 = sadd.s32 1, %s17
    %p23 = scmp.ge.s32.totalorder %s22, 1
    %s24 = scalar_select %p23, 0, %s22
    %s25 = sadd.s32 1, %s16
    %s26 = scalar_select %p23, %s25, %s16
    %p27 = scmp.ge.s32.totalorder %s26, 2
    %s28 = scalar_select %p27, 0, %s26
    %s29 = ssub.s32 %s16, %s28
    %s30 = ssub.s32 %s17, %s24
    %s31 = sor.u32 %s29, %s30
    %p32 = scmp.eq.s32.totalorder %s31, 0
    %s34 = sadd.s32 %s33, 1
    %s35 = scalar_select %p32, %s33, %s34
    %p38 = pneg %p32
    %p39 = scmp.eq.s32.totalorder %s9, 1
    %p40 = por %p38, %p39
    %p41 = scmp.ne.s32.totalorder %s33, %s36
    %p42 = scmp.eq.s32.totalorder %s9, 0
    %p43 = por %p41, %p42
    %p44 = scmp.ne.s32.totalorder %s33, %s36
    %p45 = scmp.eq.s32.totalorder %s14, 1
    %p46 = por %p44, %p45
    %p47 = scmp.ne.s32.totalorder %s36, %s37
    %p48 = scmp.eq.s32.totalorder %s14, 0
    %p49 = por %p47, %p48
    %p50 = scmp.ne.s32.totalorder %s36, %s37
    %p51 = scmp.eq.s32.totalorder %s15, 1
    %p52 = por %p50, %p51
    %p54 = scmp.ne.s32.totalorder %s37, %s53
    %p55 = scmp.eq.s32.totalorder %s15, 0
    %p56 = por %p54, %p55
    %s58 = sadd.s32 %s57, 1
    %p61 = scmp.eq.s32.totalorder %s9, 1
    %p62 = scmp.ne.s32.totalorder %s57, %s59
    %p63 = scmp.eq.s32.totalorder %s9, 0
    %p64 = por %p62, %p63
    %p65 = scmp.ne.s32.totalorder %s57, %s59
    %p66 = scmp.eq.s32.totalorder %s14, 1
    %p67 = por %p65, %p66
    %p68 = scmp.ne.s32.totalorder %s59, %s60
    %p69 = scmp.eq.s32.totalorder %s14, 0
    %p70 = por %p68, %p69
    %p71 = scmp.ne.s32.totalorder %s59, %s60
    %p72 = scmp.eq.s32.totalorder %s15, 1
    %p73 = por %p71, %p72
    %p75 = scmp.ne.s32.totalorder %s60, %s74
    %p76 = scmp.eq.s32.totalorder %s15, 0
    %p77 = por %p75, %p76
    %s79 = sadd.s32 %s78, 1
    %p82 = scmp.eq.s32.totalorder %s9, 1
    %p83 = scmp.ne.s32.totalorder %s78, %s80
    %p84 = scmp.eq.s32.totalorder %s9, 0
    %p85 = por %p83, %p84
    %p86 = scmp.ne.s32.totalorder %s78, %s80
    %p87 = scmp.eq.s32.totalorder %s14, 1
    %p88 = por %p86, %p87
    %p89 = scmp.ne.s32.totalorder %s80, %s81
    %p90 = scmp.eq.s32.totalorder %s14, 0
    %p91 = por %p89, %p90
    %p92 = scmp.ne.s32.totalorder %s80, %s81
    %p93 = scmp.eq.s32.totalorder %s15, 1
    %p94 = por %p92, %p93
    %p96 = scmp.ne.s32.totalorder %s81, %s95
    %p97 = scmp.eq.s32.totalorder %s15, 0
    %p98 = por %p96, %p97
    %s99 = ssub.s32 %s16, %s28
    %s100 = ssub.s32 %s17, %s24
    %s101 = sor.u32 %s99, %s100
    %p102 = scmp.eq.s32.totalorder %s101, 0
    %s104 = sadd.s32 %s103, 1
    %s105 = scalar_select %p102, %s103, %s104
    %p108 = pneg %p102
    %p109 = scmp.eq.s32.totalorder %s9, 1
    %p110 = por %p108, %p109
    %p111 = scmp.ne.s32.totalorder %s103, %s106
    %p112 = scmp.eq.s32.totalorder %s9, 0
    %p113 = por %p111, %p112
    %p114 = scmp.ne.s32.totalorder %s103, %s106
    %p115 = scmp.eq.s32.totalorder %s14, 1
    %p116 = por %p114, %p115
    %p117 = scmp.ne.s32.totalorder %s106, %s107
    %p118 = scmp.eq.s32.totalorder %s14, 0
    %p119 = por %p117, %p118
    %p120 = scmp.ne.s32.totalorder %s106, %s107
    %p121 = scmp.eq.s32.totalorder %s15, 1
    %p122 = por %p120, %p121
    %p124 = scmp.ne.s32.totalorder %s107, %s123
    %p125 = scmp.eq.s32.totalorder %s15, 0
    %p126 = por %p124, %p125
    %p127 = scmp.le.s32.totalorder 1, %s9
    %p128 = scmp.lt.s32.totalorder %s9, 3
    %p129 = pnand %p127, %p128
    %p130 = pneg %p129
    // Predicated region
    $region9: #{down_wt.1} parent=5 // pred_check
      _
    $region10: #{down_wt.1} parent=5 // pred_check_branch
      %132 = sbr.rel (%p129) target = $region12
    $region11: #{down_wt.1} parent=5 // pred_region
      %s133 = ssub.s32 %s9, 1
      // Predicated region
      $region13: #{down_wt.1} parent=11 // pred_check
        %p134 = pneg %p70
      $region14: #{down_wt.1} parent=11 // pred_check_branch
        %136 = sbr.rel (%p134) target = $region16
      $region15: #{down_wt.1} parent=11 // pred_region
        _
      $region16: #{down_wt.1} parent=11 // pred_fallthru
        _
      // Predicated region
      $region17: #{down_wt.1} parent=11 // pred_check
        %p137 = pneg %p91
      $region18: #{down_wt.1} parent=11 // pred_check_branch
        %139 = sbr.rel (%p137) target = $region20
      $region19: #{down_wt.1} parent=11 // pred_region
        _
      $region20: #{down_wt.1} parent=11 // pred_fallthru
        _
    $region12: #{down_wt.1} parent=5 // pred_fallthru
      _
    %p140 = scmp.lt.s32.totalorder %s9, 2
    // Predicated region
    $region21: #{down_wt.1} parent=5 // pred_check
      %p141 = pneg %p140
    $region22: #{down_wt.1} parent=5 // pred_check_branch
      %143 = sbr.rel (%p141) target = $region24
    $region23: #{down_wt.1} parent=5 // pred_region
      // Predicated region
      $region25: #{down_wt.1} parent=23 // pred_check
        %p144 = pneg %p43
      $region26: #{down_wt.1} parent=23 // pred_check_branch
        %146 = sbr.rel (%p144) target = $region28
      $region27: #{down_wt.1} parent=23 // pred_region
        %p147 = scmp.lt.s32.totalorder %s16, 1
        %s148 = scalar_select %p147, %s16, 1
        %p149 = scmp.lt.s32.totalorder %s17, 0
        %s150 = scalar_select %p149, %s17, 0
        %s151 = smul.addr %s148, 2
        %s152 = sadd.s32 %s150, %s151
        %s153 = smul.addr %s152, 8
        %s154 = scalar_lea.vmem %s0, %s153
      $region28: #{down_wt.1} parent=23 // pred_fallthru
        _
    $region24: #{down_wt.1} parent=5 // pred_fallthru
      _
    %p155 = scmp.le.s32.totalorder 1, %s9
    %p156 = scmp.lt.s32.totalorder %s9, 3
    %p157 = pnand %p155, %p156
    %p158 = pneg %p157
    // Predicated region
    $region29: #{down_wt.1} parent=5 // pred_check
      _
    $region30: #{down_wt.1} parent=5 // pred_check_branch
      %160 = sbr.rel (%p157) target = $region32
    $region31: #{down_wt.1} parent=5 // pred_region
      %s161 = ssub.s32 %s9, 1
      %p162 = scmp.lt.s32.totalorder %s18, 1
      %s163 = scalar_select %p162, %s18, 1
      %p164 = scmp.lt.s32.totalorder %s19, 0
      %s165 = scalar_select %p164, %s19, 0
      %s166 = smul.addr %s163, 2
      %s167 = sadd.s32 %s165, %s166
      %s168 = smul.addr %s167, 8
      %s169 = scalar_lea.vmem %s0, %s168
      %p170 = pneg %p49
      %p171 = pneg %p46
      %p172 = pneg %p70
      %p173 = pneg %p67
      %p174 = pneg %p91
      %p175 = pneg %p88
      %p176 = pneg %p119
      %p177 = pneg %p116
      %p178 = scmp.lt.s32.totalorder %s18, 1
      %s179 = scalar_select %p178, %s18, 1
      %p180 = scmp.lt.s32.totalorder %s19, 0
      %s181 = scalar_select %p180, %s19, 0
      %s182 = sadd.s32 %s181, %s179
      %s183 = smul.addr %s182, 8
      %s184 = scalar_lea.vmem %s3, %s183
      %p185 = scmp.lt.s32.totalorder %s18, 1
      %s186 = scalar_select %p185, %s18, 1
      %p187 = scmp.lt.s32.totalorder %s19, 0
      %s188 = scalar_select %p187, %s19, 0
      %s189 = smul.addr %s186, 2
      %s190 = sadd.s32 %s188, %s189
      %s191 = smul.addr %s190, 8
      %s192 = scalar_lea.vmem %s0, %s191
      %p193 = scmp.lt.s32.totalorder %s18, 1
      %s194 = scalar_select %p193, %s18, 1
      %p195 = scmp.lt.s32.totalorder %s19, 0
      %s196 = scalar_select %p195, %s19, 0
      %s197 = sadd.s32 %s196, %s194
      %s198 = smul.addr %s197, 8
      %s199 = scalar_lea.vmem %s3, %s198
      %v200 = vld [vmem:[%s192] sm:$0xff]
      %v201 = vld [vmem:[%s192 + $0x8] sm:$0xff]
      %v202 = vld [vmem:[%s1] sm:$0xff]
      %v203 = vld [vmem:[%s2] sm:$0xff]
      %205 = vset.pattern.permute.xlu0 0
      %206 = vperm.xlu0 %205, %v203
      %v207 = vpop.permute.xlu0 %206
      %vm209 = vcmask 130048
      %v211 = vsel %vm209, %v202, 0
      %213 = vmatprep.subr.mxu0 0.0
      %214 = vmatpush1.msra.mxu0 0.0
      %215 = vmatprep.subr.mxu0 0.0
      %216 = vmatpush1.msra.mxu0 0.0
      %217 = vmatprep.subr.mxu0 0.0
      %218 = vmatpush1.msra.mxu0 0.0
      %219 = vmatprep.subr.mxu0 0.0
      %220 = vmatpush1.msra.mxu0 0.0
      %221 = vmatprep.subr.mxu0 0.0
      %222 = vmatpush1.msra.mxu0 0.0
      %223 = vmatprep.subr.mxu0 0.0
      %224 = vmatpush1.msra.mxu0 0.0
      %225 = vmatprep.subr.mxu0 0.0
      %226 = vmatpush1.msra.mxu0 0.0
      %227 = vmatprep.subr.mxu0 0.0
      %228 = vmatpush1.msra.mxu0 0.0
      %229 = vmatprep.subr.mxu0 0.0
      %230 = vmatpush1.msra.mxu0 0.0
      %231 = vmatprep.subr.mxu0 0.0
      %232 = vmatpush1.msra.mxu0 0.0
      %233 = vmatprep.subr.mxu0 0.0
      %234 = vmatpush1.msra.mxu0 0.0
      %235 = vmatprep.subr.mxu0 0.0
      %236 = vmatpush1.msra.mxu0 0.0
      %237 = vmatprep.subr.mxu0 0.0
      %238 = vmatpush1.msra.mxu0 0.0
      %239 = vmatprep.subr.mxu0 0.0
      %240 = vmatpush1.msra.mxu0 0.0
      %241 = vmatprep.subr.mxu0 0.0
      %242 = vmatpush1.msra.mxu0 %v201
      %243 = vmatprep.subr.mxu0 0.0
      %244 = vmatpush1.msra.mxu0 %v200
      %245 = vmatprep.subr.mxu0 0.0
      %246 = vmatpush2.msra.mxu0 0.0
      %247 = vmatprep.subr.mxu0 0.0
      %248 = vmatpush2.msra.mxu0 0.0
      %249 = vmatprep.subr.mxu0 0.0
      %250 = vmatpush2.msra.mxu0 0.0
      %251 = vmatprep.subr.mxu0 0.0
      %252 = vmatpush2.msra.mxu0 0.0
      %253 = vmatprep.subr.mxu0 0.0
      %254 = vmatpush2.msra.mxu0 0.0
      %255 = vmatprep.subr.mxu0 0.0
      %256 = vmatpush2.msra.mxu0 0.0
      %257 = vmatprep.subr.mxu0 0.0
      %258 = vmatpush2.msra.mxu0 0.0
      %259 = vmatprep.subr.mxu0 0.0
      %260 = vmatpush2.msra.mxu0 0.0
      %261 = vmatprep.subr.mxu0 0.0
      %262 = vmatpush2.msra.mxu0 0.0
      %263 = vmatprep.subr.mxu0 0.0
      %264 = vmatpush2.msra.mxu0 0.0
      %265 = vmatprep.subr.mxu0 0.0
      %266 = vmatpush2.msra.mxu0 0.0
      %267 = vmatprep.subr.mxu0 0.0
      %268 = vmatpush2.msra.mxu0 0.0
      %269 = vmatprep.subr.mxu0 0.0
      %270 = vmatpush2.msra.mxu0 0.0
      %271 = vmatprep.subr.mxu0 0.0
      %272 = vmatpush2.msra.mxu0 0.0
      %273 = vmatprep.subr.mxu0 0.0
      %274 = vmatpush2.msra.mxu0 0.0
      %275 = vmatprep.subr.mxu0 0.0
      %276 = vmatpush2.msra.mxu0 0.0
      %277 = vmatprep.mubr.f32.mxu0 0.0
      %278 = vmatmul.mubr.f32.gmra.mxu0 %v211
      %v279 = vpop.f32.mrf.mxu0
      %v280 = vadd.f32 %v207, %v279
      %v281 = vpop.f32.mrf.mxu0
      %282 = vdwg.mxu0
      %v283 = vmax.f32 %v280, 0.0
      %vm284 = vcmask 523264
      %285 = vst.msk [vmem:[%s199] sm:$0xff] %vm284, %v283
      %p286 = scmp.lt.s32.totalorder %s18, 1
      %s287 = scalar_select %p286, %s18, 1
      %p288 = scmp.lt.s32.totalorder %s19, 0
      %s289 = scalar_select %p288, %s19, 0
      %s290 = sadd.s32 %s289, %s287
      %s291 = smul.addr %s290, 8
      %s292 = scalar_lea.vmem %s3, %s291
      // Predicated region
      $region33: #{down_wt.1} parent=31 // pred_check
        %p293 = pneg %p116
      $region34: #{down_wt.1} parent=31 // pred_check_branch
        %295 = sbr.rel (%p293) target = $region36
      $region35: #{down_wt.1} parent=31 // pred_region
        _
      $region36: #{down_wt.1} parent=31 // pred_fallthru
        _
    $region32: #{down_wt.1} parent=5 // pred_fallthru
      _
    %p296 = scmp.le.s32.totalorder 2, %s9
    // Predicated region
    $region37: #{down_wt.1} parent=5 // pred_check
      %p297 = pneg %p296
    $region38: #{down_wt.1} parent=5 // pred_check_branch
      %299 = sbr.rel (%p297) target = $region40
    $region39: #{down_wt.1} parent=5 // pred_region
      %s300 = ssub.s32 %s9, 2
      // Predicated region
      $region41: #{down_wt.1} parent=39 // pred_check
        %p301 = pneg %p122
      $region42: #{down_wt.1} parent=39 // pred_check_branch
        %303 = sbr.rel (%p301) target = $region44
      $region43: #{down_wt.1} parent=39 // pred_region
        %p304 = scmp.lt.s32.totalorder %s20, 1
        %s305 = scalar_select %p304, %s20, 1
        %p306 = scmp.lt.s32.totalorder %s21, 0
        %s307 = scalar_select %p306, %s21, 0
        %s308 = sadd.s32 %s307, %s305
        %s309 = smul.addr %s308, 8
        %s310 = scalar_lea.vmem %s3, %s309
      $region44: #{down_wt.1} parent=39 // pred_fallthru
        _
    $region40: #{down_wt.1} parent=5 // pred_fallthru
      _
  $region6: #{down_wt.1} parent=0 // loop_footer
    %s13 = sadd.s32 1, %s9
  $region7: #{down_wt.1} parent=0 // loop_footer_branch
    %8 = sbr.rel target = $region3
  $region8: #{down_wt.1} parent=0 // loop_exit
    _

</llo_original>
